<compile_context>
chip_gen: v7x
topology: tpu7x:2x2x1
jax: 0.10.0
libtpu: 0.0.40
codegen_flags: <defaults>
</compile_context>

<pallas_src>
import functools

import jax
import jax.numpy as jnp
from jax.experimental import pallas as pl
from jax.experimental.pallas import tpu as pltpu

LANE = 128              # column block width in the packed weight matrix
H1, H2, H3 = 128, 64, 32  # hidden widths fixed by the PyTorch module


def _round_up(n, m):
    return (n + m - 1) // m * m


def _mlp_softmax_kernel(x_ref, w_ref, b_ref, out_ref, *, in_features, num_classes):
    """Fused 4-layer MLP + ReLU + softmax on one batch tile.

    x_ref  : (bb, in_features) bf16 batch tile (features unpadded).
    w_ref  : (Kp, 4*LANE) bf16 -- w1..w4 zero-padded to (Kp, LANE) each and
             concatenated along the column axis.
    b_ref  : (1, 4*LANE) f32   -- b1..b4 zero-padded and concatenated.
    out_ref: (bb, num_classes) f32 softmax probabilities.

    Dot operands are bf16 (MXU-native everywhere); accumulation and all
    elementwise work (bias add / ReLU / softmax) stay f32 (v5e-safe).
    """
    f32 = jnp.float32
    x = x_ref[...]                                               # (bb, F) bf16

    # Layer 1: Linear + ReLU   (Dropout(0.3) is identity in eval mode).
    # Only the first `in_features` rows of the layer-1 weight block are real.
    h = jnp.dot(x, w_ref[0:in_features, 0:LANE], preferred_element_type=f32)
    h = jnp.maximum(h + b_ref[:, 0:LANE], 0.0)

    # Layer 2: Linear + ReLU   (Dropout(0.2) is identity in eval mode).
    h = jnp.dot(h.astype(jnp.bfloat16), w_ref[0:LANE, LANE:2 * LANE],
                preferred_element_type=f32)
    h = jnp.maximum(h + b_ref[:, LANE:2 * LANE], 0.0)

    # Layer 3: Linear + ReLU.
    h = jnp.dot(h.astype(jnp.bfloat16), w_ref[0:LANE, 2 * LANE:3 * LANE],
                preferred_element_type=f32)
    h = jnp.maximum(h + b_ref[:, 2 * LANE:3 * LANE], 0.0)

    # Layer 4: Linear -> logits. Only the first num_classes columns are real;
    # slice them out BEFORE the softmax so padded lanes never enter the reduce.
    logits = jnp.dot(h.astype(jnp.bfloat16), w_ref[0:LANE, 3 * LANE:4 * LANE],
                     preferred_element_type=f32)
    logits = logits[:, 0:num_classes] + b_ref[:, 3 * LANE:3 * LANE + num_classes]

    # Numerically stable softmax with an EXACT reciprocal: rows sum to 1 to
    # f32 rounding (the approximate EUP reciprocal broke the row-sum check).
    m = jnp.max(logits, axis=1, keepdims=True)
    e = jnp.exp(logits - m)
    out_ref[...] = (e / jnp.sum(e, axis=1, keepdims=True)).astype(out_ref.dtype)


def smart_grid_nn_forward(x, params, *, block_b=512):
    """SmartGridNN forward. x: (B, input_size) f32 -> (B, num_classes) f32 probs.

    block_b: max batch tile (rows). 512 is VMEM-safe on every generation
    (well under v7x's 32 MiB scoped VMEM); it can be raised on v5e/v6e
    (128 MiB VMEM) for very large batches to amortize per-step overhead.
    """
    (w1, b1), (w2, b2), (w3, b3), (w4, b4) = params
    B, F = x.shape
    num_classes = w4.shape[1]
    assert w1.shape == (F, H1) and w2.shape == (H1, H2) and w3.shape == (H2, H3)
    assert w4.shape[0] == H3 and num_classes <= LANE

    # ---- pack weights/biases once: (Kp, 4*LANE) bf16 + (1, 4*LANE) f32 ----
    # Zero padding keeps the math exact: padded hidden units produce ReLU(0)=0
    # and their outgoing weight rows are zero.
    Kp = _round_up(max(F, H1), 16)                 # bf16 sublane pack = 16 rows
    wcat = jnp.zeros((Kp, 4 * LANE), jnp.float32)
    wcat = wcat.at[:F, 0:H1].set(w1)
    wcat = wcat.at[:H1, LANE:LANE + H2].set(w2)
    wcat = wcat.at[:H2, 2 * LANE:2 * LANE + H3].set(w3)
    wcat = wcat.at[:H3, 3 * LANE:3 * LANE + num_classes].set(w4)
    wcat = wcat.astype(jnp.bfloat16)               # one-time MXU-operand cast

    bcat = jnp.zeros((1, 4 * LANE), jnp.float32)
    bcat = bcat.at[:, 0:H1].set(b1)
    bcat = bcat.at[:, LANE:LANE + H2].set(b2)
    bcat = bcat.at[:, 2 * LANE:2 * LANE + H3].set(b3)
    bcat = bcat.at[:, 3 * LANE:3 * LANE + num_classes].set(b4)

    # ---- batch tile: multiple of 16 (bf16 sublane pack), capped at block_b,
    # sized so the grid has >= 2 steps when the batch allows it (v7x has two
    # TensorCores; the "parallel" batch axis shards grid steps across them).
    bb = max(16, min(block_b, _round_up(-(-B // 2), 16)))
    Bp = _round_up(B, bb)
    grid = (Bp // bb,)

    # Stream x as bf16; pad only the batch (sublane) dim, never the features.
    xb = x.astype(jnp.bfloat16)
    xp = xb if Bp == B else jnp.zeros((Bp, F), jnp.bfloat16).at[:B, :].set(xb)

    kernel = functools.partial(_mlp_softmax_kernel,
                               in_features=F, num_classes=num_classes)

    cost = pl.CostEstimate(
        flops=2 * Bp * LANE * (F + 3 * LANE),
        transcendentals=Bp * num_classes,
        bytes_accessed=(xp.size * 2 + wcat.size * 2 + bcat.size * 4
                        + Bp * num_classes * 4),
    )

    out_padded = pl.pallas_call(
        kernel,
        out_shape=jax.ShapeDtypeStruct((Bp, num_classes), jnp.float32),
        grid_spec=pltpu.PrefetchScalarGridSpec(
            num_scalar_prefetch=0,
            grid=grid,
            in_specs=[
                pl.BlockSpec((bb, F), lambda i: (i, 0)),         # x batch tile (F == full dim)
                pl.BlockSpec((Kp, 4 * LANE), lambda i: (0, 0)),  # packed weights (grid-invariant)
                pl.BlockSpec((1, 4 * LANE), lambda i: (0, 0)),   # packed biases (grid-invariant)
            ],
            # Lane dim == num_classes == full array dim -> legal block, and no
            # post-kernel lane-slice / padded-output writeback pass.
            out_specs=pl.BlockSpec((bb, num_classes), lambda i: (i, 0)),
        ),
        compiler_params=pltpu.CompilerParams(
            dimension_semantics=("parallel",),   # v7x: shard batch tiles over both TCs
        ),
        cost_estimate=cost,
    )(xp, wcat, bcat)

    return out_padded if Bp == B else out_padded[:B]


def init_params(key, input_size, num_classes):
    """PyTorch-Linear-style init U(-1/sqrt(fan_in), +1/sqrt(fan_in)).

    Weights stored as (in_features, out_features); biases as (1, out_features)."""
    dims = [(input_size, H1), (H1, H2), (H2, H3), (H3, num_classes)]
    params = []
    for (fan_in, fan_out) in dims:
        key, kw, kb = jax.random.split(key, 3)
        bound = 1.0 / (fan_in ** 0.5)
        w = jax.random.uniform(kw, (fan_in, fan_out), jnp.float32, -bound, bound)
        b = jax.random.uniform(kb, (1, fan_out), jnp.float32, -bound, bound)
        params.append((w, b))
    return params


def reference_forward(x, params):
    """Plain-JAX reference mirroring the kernel's bf16-matmul / f32-accumulate path."""
    h = x
    for i, (w, b) in enumerate(params):
        h = jnp.dot(h.astype(jnp.bfloat16), w.astype(jnp.bfloat16),
                    preferred_element_type=jnp.float32) + b
        if i < 3:
            h = jnp.maximum(h, 0.0)
    return jax.nn.softmax(h, axis=1)


if __name__ == "__main__":
    INPUT_SIZE = 32
    NUM_CLASSES = 4
    BATCH = 200          # not a tile multiple -> exercises the batch-padding path

    key = jax.random.PRNGKey(0)
    key, kx = jax.random.split(key)
    x = jax.random.normal(kx, (BATCH, INPUT_SIZE), jnp.float32)
    params = init_params(key, INPUT_SIZE, NUM_CLASSES)

    out = smart_grid_nn_forward(x, params)
    out = jax.block_until_ready(out)

    ref = reference_forward(x, params)

    assert out.shape == (BATCH, NUM_CLASSES)
    assert bool(jnp.all(jnp.isfinite(out)))
    # Exact-reciprocal softmax: each row sums to 1 to f32 rounding.
    assert jnp.allclose(jnp.sum(out, axis=1), 1.0, atol=1e-4)
    # Match the bf16-matmul / f32-accumulate reference.
    assert jnp.allclose(out, ref, atol=2e-3, rtol=2e-2)

    print("KERNEL_OK")
</pallas_src>

<mosaic_0001>
module attributes {stable_mosaic.version = 11 : i64} {
  func.func @_mlp_softmax_kernel(%arg0: i32, %arg1: memref<112x32xbf16, #tpu.memory_space<vmem>>, %arg2: memref<128x512xbf16, #tpu.memory_space<vmem>>, %arg3: memref<1x512xf32, #tpu.memory_space<vmem>>, %arg4: memref<112x4xf32, #tpu.memory_space<vmem>>) attributes {dimension_semantics = [#tpu.dimension_semantics<parallel>], iteration_bounds = array<i64: 2>, scalar_prefetch = 0 : i64, scratch_operands = 0 : i64, tpu.core_type = #tpu.core_type<tc>, window_params = [{transform_indices = @transform_0, window_bounds = array<i64: 112, 32>}, {pipeline_mode = #tpu.pipeline_mode<synchronous>, transform_indices = @transform_1, window_bounds = array<i64: 128, 512>}, {pipeline_mode = #tpu.pipeline_mode<synchronous>, transform_indices = @transform_2, window_bounds = array<i64: 1, 512>}, {transform_indices = @transform_3, window_bounds = array<i64: 112, 4>}]} {
    %c0 = arith.constant 0 : index
    %c0_0 = arith.constant 0 : index
    %0 = vector.load %arg1[%c0, %c0_0] : memref<112x32xbf16, #tpu.memory_space<vmem>>, vector<112x32xbf16>
    %c0_1 = arith.constant 0 : index
    %c0_2 = arith.constant 0 : index
    %1 = vector.load %arg2[%c0_1, %c0_2] : memref<128x512xbf16, #tpu.memory_space<vmem>>, vector<32x128xbf16>
    %cst = arith.constant dense<0.000000e+00> : vector<112x128xf32>
    %2 = tpu.matmul %0, %1, %cst {dimension_numbers = #tpu.dot_dimension_numbers<[1], [0], [0], [1], [0, 0, 1, 1], [], []>} : vector<112x32xbf16>, vector<32x128xbf16>, vector<112x128xf32> -> vector<112x128xf32>
    %c0_3 = arith.constant 0 : index
    %c0_4 = arith.constant 0 : index
    %3 = vector.load %arg3[%c0_3, %c0_4] : memref<1x512xf32, #tpu.memory_space<vmem>>, vector<1x128xf32>
    %4 = vector.broadcast %3 : vector<1x128xf32> to vector<112x128xf32>
    %5 = arith.addf %2, %4 : vector<112x128xf32>
    %cst_5 = arith.constant 0.000000e+00 : f32
    %6 = vector.broadcast %cst_5 : f32 to vector<112x128xf32>
    %7 = arith.maximumf %5, %6 : vector<112x128xf32>
    %8 = arith.truncf %7 : vector<112x128xf32> to vector<112x128xbf16>
    %c0_6 = arith.constant 0 : index
    %c128 = arith.constant 128 : index
    %9 = vector.load %arg2[%c0_6, %c128] : memref<128x512xbf16, #tpu.memory_space<vmem>>, vector<128x128xbf16>
    %cst_7 = arith.constant dense<0.000000e+00> : vector<112x128xf32>
    %10 = tpu.matmul %8, %9, %cst_7 {dimension_numbers = #tpu.dot_dimension_numbers<[1], [0], [0], [1], [0, 0, 1, 1], [], []>} : vector<112x128xbf16>, vector<128x128xbf16>, vector<112x128xf32> -> vector<112x128xf32>
    %c0_8 = arith.constant 0 : index
    %c128_9 = arith.constant 128 : index
    %11 = vector.load %arg3[%c0_8, %c128_9] : memref<1x512xf32, #tpu.memory_space<vmem>>, vector<1x128xf32>
    %12 = vector.broadcast %11 : vector<1x128xf32> to vector<112x128xf32>
    %13 = arith.addf %10, %12 : vector<112x128xf32>
    %cst_10 = arith.constant 0.000000e+00 : f32
    %14 = vector.broadcast %cst_10 : f32 to vector<112x128xf32>
    %15 = arith.maximumf %13, %14 : vector<112x128xf32>
    %16 = arith.truncf %15 : vector<112x128xf32> to vector<112x128xbf16>
    %c0_11 = arith.constant 0 : index
    %c256 = arith.constant 256 : index
    %17 = vector.load %arg2[%c0_11, %c256] : memref<128x512xbf16, #tpu.memory_space<vmem>>, vector<128x128xbf16>
    %cst_12 = arith.constant dense<0.000000e+00> : vector<112x128xf32>
    %18 = tpu.matmul %16, %17, %cst_12 {dimension_numbers = #tpu.dot_dimension_numbers<[1], [0], [0], [1], [0, 0, 1, 1], [], []>} : vector<112x128xbf16>, vector<128x128xbf16>, vector<112x128xf32> -> vector<112x128xf32>
    %c0_13 = arith.constant 0 : index
    %c256_14 = arith.constant 256 : index
    %19 = vector.load %arg3[%c0_13, %c256_14] : memref<1x512xf32, #tpu.memory_space<vmem>>, vector<1x128xf32>
    %20 = vector.broadcast %19 : vector<1x128xf32> to vector<112x128xf32>
    %21 = arith.addf %18, %20 : vector<112x128xf32>
    %cst_15 = arith.constant 0.000000e+00 : f32
    %22 = vector.broadcast %cst_15 : f32 to vector<112x128xf32>
    %23 = arith.maximumf %21, %22 : vector<112x128xf32>
    %24 = arith.truncf %23 : vector<112x128xf32> to vector<112x128xbf16>
    %c0_16 = arith.constant 0 : index
    %c384 = arith.constant 384 : index
    %25 = vector.load %arg2[%c0_16, %c384] : memref<128x512xbf16, #tpu.memory_space<vmem>>, vector<128x128xbf16>
    %cst_17 = arith.constant dense<0.000000e+00> : vector<112x128xf32>
    %26 = tpu.matmul %24, %25, %cst_17 {dimension_numbers = #tpu.dot_dimension_numbers<[1], [0], [0], [1], [0, 0, 1, 1], [], []>} : vector<112x128xbf16>, vector<128x128xbf16>, vector<112x128xf32> -> vector<112x128xf32>
    %27 = vector.extract_strided_slice %26 {offsets = [0, 0], sizes = [112, 4], strides = [1, 1]} : vector<112x128xf32> to vector<112x4xf32>
    %c0_18 = arith.constant 0 : index
    %c384_19 = arith.constant 384 : index
    %28 = vector.load %arg3[%c0_18, %c384_19] : memref<1x512xf32, #tpu.memory_space<vmem>>, vector<1x4xf32>
    %29 = vector.broadcast %28 : vector<1x4xf32> to vector<112x4xf32>
    %30 = arith.addf %27, %29 : vector<112x4xf32>
    %cst_20 = arith.constant dense<0xFF800000> : vector<112xf32>
    %31 = vector.multi_reduction <maximumf>, %30, %cst_20 [1] : vector<112x4xf32> to vector<112xf32>
    %32 = vector.shape_cast %31 : vector<112xf32> to vector<112x1xf32>
    %33 = vector.broadcast %32 : vector<112x1xf32> to vector<112x4xf32>
    %34 = arith.subf %30, %33 : vector<112x4xf32>
    %35 = math.exp %34 : vector<112x4xf32>
    %cst_21 = arith.constant dense<0.000000e+00> : vector<112xf32>
    %36 = vector.multi_reduction <add>, %35, %cst_21 [1] : vector<112x4xf32> to vector<112xf32>
    %37 = vector.shape_cast %36 : vector<112xf32> to vector<112x1xf32>
    %38 = vector.broadcast %37 : vector<112x1xf32> to vector<112x4xf32>
    %39 = arith.divf %35, %38 : vector<112x4xf32>
    %c0_22 = arith.constant 0 : index
    %c0_23 = arith.constant 0 : index
    %40 = vector.load %arg4[%c0_22, %c0_23] : memref<112x4xf32, #tpu.memory_space<vmem>>, vector<112x4xf32>
    tpu.vector_store %arg4[%c0_22, %c0_23], %39 {strides = array<i32>} : memref<112x4xf32, #tpu.memory_space<vmem>>, vector<112x4xf32>,
    return
  }
  func.func @transform_0(%arg0: i32) -> (i32, i32) {
    %c0_i32 = arith.constant 0 : i32
    %c0_i32_0 = arith.constant 0 : i32
    return %arg0, %c0_i32 : i32, i32
  }
  func.func @transform_1(%arg0: i32) -> (i32, i32) {
    %c0_i32 = arith.constant 0 : i32
    %c0_i32_0 = arith.constant 0 : i32
    %c0_i32_1 = arith.constant 0 : i32
    return %c0_i32, %c0_i32_0 : i32, i32
  }
  func.func @transform_2(%arg0: i32) -> (i32, i32) {
    %c0_i32 = arith.constant 0 : i32
    %c0_i32_0 = arith.constant 0 : i32
    %c0_i32_1 = arith.constant 0 : i32
    return %c0_i32, %c0_i32_0 : i32, i32
  }
  func.func @transform_3(%arg0: i32) -> (i32, i32) {
    %c0_i32 = arith.constant 0 : i32
    %c0_i32_0 = arith.constant 0 : i32
    return %arg0, %c0_i32 : i32, i32
  }
}

</mosaic_0001>

<llo_original>
// kernel: tpu_custom_call.1
$region0: #{tpu_custom_call.1}
  #allocation0 [shape = 'u32[]', space=smem, size = 0x4, offset = 0x4, fixed_abs, tag = 'smem constant byte address 0x4 - core index']
  #allocation1 [shape = 'u32[144,128]{1,0:T(1,128)}', space=vmem, size = 0x12000, scoped, tag = 'internal scratch']
  %s0 = inlined_call_operand.vmem [shape: bf16[224,32], index: 0, kind: input, shape index: {}]
  %s1 = inlined_call_operand.hbm [shape: bf16[128,512], index: 1, kind: input, shape index: {}]
  %s2 = inlined_call_operand.vmem [shape: f32[1,512], index: 2, kind: input, shape index: {}]
  %s3 = inlined_call_operand.vmem [shape: f32[224,4], index: 3, kind: output, shape index: {}]
  %s4 = sld [smem:[#allocation0]]
  $region49: #{tpu_custom_call.1} parent=0
    _
  %s6 = ssub.s32 1, %s4
  %s7 = scalar_select 0, %s6, %s4
  $region1: #{tpu_custom_call.1} parent=0
    #allocation2 [shape = 'u8[131072]{0}', space=vmem, size = 0x20000, scoped, tag = 'input window, operand 1, single buffered']
    #allocation3 [shape = 's32[2]{0}', space=sflag, size = 0x8, scoped, tag = 'scoped memory for tpu_custom_call.1']
    %8 = vsyncpa [#allocation3], 0
    loop: start=0, step=1, limit=4
    $region2: #{tpu_custom_call.1} parent=1 // loop_pre_header
      _
    $region3: #{tpu_custom_call.1} parent=1 // loop_header
      %s10 = sphi 0, %s14
      %p11 = scmp.ge.s32.totalorder %s10, 4
      %s20 = sphi 0, %s22
      %s23 = sphi 0, %s20
      %s24 = sphi 0, %s23
      %s40 = sphi 0, %s24
      %s44 = sphi 0, %s44
      %s46 = sphi 0, %s44
      %s47 = sphi 0, %s46
      %s61 = sphi 0, %s47
      %s65 = sphi 0, %s65
      %s67 = sphi 0, %s65
      %s68 = sphi 0, %s67
      %s82 = sphi 0, %s68
      %s88 = sphi 0, %s90
      %s91 = sphi 0, %s88
      %s92 = sphi 0, %s91
      %s108 = sphi 0, %s92
    $region4: #{tpu_custom_call.1} parent=1 // loop_header_branch
      %13 = sbr.rel (%p11) target = $region8
    $region5: #{tpu_custom_call.1} parent=1 // loop_body
      %s15 = ssub.s32 %s10, 1
      %s16 = ssub.s32 %s10, 2
      %s17 = sadd.s32 %s10, 1
      %s18 = ssub.s32 %s10, %s17
      %p19 = scmp.eq.s32.totalorder %s18, 0
      %s21 = sadd.s32 %s20, 1
      %s22 = scalar_select %p19, %s20, %s21
      %p25 = pneg %p19
      %p26 = scmp.eq.s32.totalorder %s10, 1
      %p27 = por %p25, %p26
      %p28 = scmp.ne.s32.totalorder %s20, %s23
      %p29 = scmp.eq.s32.totalorder %s10, 0
      %p30 = por %p28, %p29
      %p31 = scmp.ne.s32.totalorder %s20, %s23
      %p32 = scmp.eq.s32.totalorder %s15, 1
      %p33 = por %p31, %p32
      %p34 = scmp.ne.s32.totalorder %s23, %s24
      %p35 = scmp.eq.s32.totalorder %s15, 0
      %p36 = por %p34, %p35
      %p37 = scmp.ne.s32.totalorder %s23, %s24
      %p38 = scmp.eq.s32.totalorder %s16, 1
      %p39 = por %p37, %p38
      %p41 = scmp.ne.s32.totalorder %s24, %s40
      %p42 = scmp.eq.s32.totalorder %s16, 0
      %p43 = por %p41, %p42
      %s45 = sadd.s32 %s44, 1
      %p48 = scmp.eq.s32.totalorder %s10, 1
      %p49 = scmp.ne.s32.totalorder %s44, %s46
      %p50 = scmp.eq.s32.totalorder %s10, 0
      %p51 = por %p49, %p50
      %p52 = scmp.ne.s32.totalorder %s44, %s46
      %p53 = scmp.eq.s32.totalorder %s15, 1
      %p54 = por %p52, %p53
      %p55 = scmp.ne.s32.totalorder %s46, %s47
      %p56 = scmp.eq.s32.totalorder %s15, 0
      %p57 = por %p55, %p56
      %p58 = scmp.ne.s32.totalorder %s46, %s47
      %p59 = scmp.eq.s32.totalorder %s16, 1
      %p60 = por %p58, %p59
      %p62 = scmp.ne.s32.totalorder %s47, %s61
      %p63 = scmp.eq.s32.totalorder %s16, 0
      %p64 = por %p62, %p63
      %s66 = sadd.s32 %s65, 1
      %p69 = scmp.eq.s32.totalorder %s10, 1
      %p70 = scmp.ne.s32.totalorder %s65, %s67
      %p71 = scmp.eq.s32.totalorder %s10, 0
      %p72 = por %p70, %p71
      %p73 = scmp.ne.s32.totalorder %s65, %s67
      %p74 = scmp.eq.s32.totalorder %s15, 1
      %p75 = por %p73, %p74
      %p76 = scmp.ne.s32.totalorder %s67, %s68
      %p77 = scmp.eq.s32.totalorder %s15, 0
      %p78 = por %p76, %p77
      %p79 = scmp.ne.s32.totalorder %s67, %s68
      %p80 = scmp.eq.s32.totalorder %s16, 1
      %p81 = por %p79, %p80
      %p83 = scmp.ne.s32.totalorder %s68, %s82
      %p84 = scmp.eq.s32.totalorder %s16, 0
      %p85 = por %p83, %p84
      %s86 = ssub.s32 %s10, %s17
      %p87 = scmp.eq.s32.totalorder %s86, 0
      %s89 = sadd.s32 %s88, 1
      %s90 = scalar_select %p87, %s88, %s89
      %p93 = pneg %p87
      %p94 = scmp.eq.s32.totalorder %s10, 1
      %p95 = por %p93, %p94
      %p96 = scmp.ne.s32.totalorder %s88, %s91
      %p97 = scmp.eq.s32.totalorder %s10, 0
      %p98 = por %p96, %p97
      %p99 = scmp.ne.s32.totalorder %s88, %s91
      %p100 = scmp.eq.s32.totalorder %s15, 1
      %p101 = por %p99, %p100
      %p102 = scmp.ne.s32.totalorder %s91, %s92
      %p103 = scmp.eq.s32.totalorder %s15, 0
      %p104 = por %p102, %p103
      %p105 = scmp.ne.s32.totalorder %s91, %s92
      %p106 = scmp.eq.s32.totalorder %s16, 1
      %p107 = por %p105, %p106
      %p109 = scmp.ne.s32.totalorder %s92, %s108
      %p110 = scmp.eq.s32.totalorder %s16, 0
      %p111 = por %p109, %p110
      %p112 = scmp.le.s32.totalorder 1, %s10
      %p113 = scmp.lt.s32.totalorder %s10, 3
      %p114 = pnand %p112, %p113
      %p115 = pneg %p114
      // Predicated region
      $region9: #{tpu_custom_call.1} parent=5 // pred_check
        _
      $region10: #{tpu_custom_call.1} parent=5 // pred_check_branch
        %117 = sbr.rel (%p114) target = $region12
      $region11: #{tpu_custom_call.1} parent=5 // pred_region
        %s118 = ssub.s32 %s10, 1
        // Predicated region
        $region13: #{tpu_custom_call.1} parent=11 // pred_check
          %p119 = pneg %p57
        $region14: #{tpu_custom_call.1} parent=11 // pred_check_branch
          %121 = sbr.rel (%p119) target = $region16
        $region15: #{tpu_custom_call.1} parent=11 // pred_region
          %s123 = ssub.s32 4096, 4096
          %124 = vsyncadd [#allocation3], %s123
          %s125 = sshll.u32 [#allocation2], 4
          %s126 = int_to_ptr.vmem [resolvable:$true] %s125
          %131 = dma.hbm_to_vmem [thread:$0]  %s1, 4096, %s126, [#allocation3], 256, 256, 16
        $region16: #{tpu_custom_call.1} parent=11 // pred_fallthru
          _
        // Predicated region
        $region17: #{tpu_custom_call.1} parent=11 // pred_check
          %p132 = pneg %p78
        $region18: #{tpu_custom_call.1} parent=11 // pred_check_branch
          %134 = sbr.rel (%p132) target = $region20
        $region19: #{tpu_custom_call.1} parent=11 // pred_region
          _
        $region20: #{tpu_custom_call.1} parent=11 // pred_fallthru
          _
      $region12: #{tpu_custom_call.1} parent=5 // pred_fallthru
        _
      %p135 = scmp.lt.s32.totalorder %s10, 2
      // Predicated region
      $region21: #{tpu_custom_call.1} parent=5 // pred_check
        %p136 = pneg %p135
      $region22: #{tpu_custom_call.1} parent=5 // pred_check_branch
        %138 = sbr.rel (%p136) target = $region24
      $region23: #{tpu_custom_call.1} parent=5 // pred_region
        // Predicated region
        $region25: #{tpu_custom_call.1} parent=23 // pred_check
          %p139 = pneg %p30
        $region26: #{tpu_custom_call.1} parent=23 // pred_check_branch
          %141 = sbr.rel (%p139) target = $region28
        $region27: #{tpu_custom_call.1} parent=23 // pred_region
          %s142 = smul.u32 14, %s10
          %p143 = scmp.lt.s32.totalorder %s142, 27
          %s144 = scalar_select %p143, %s142, 27
          %s145 = smul.addr %s144, 4
          %s146 = scalar_lea.vmem %s0, %s145
          %s147 = smul.u32 14, %s10
        $region28: #{tpu_custom_call.1} parent=23 // pred_fallthru
          _
      $region24: #{tpu_custom_call.1} parent=5 // pred_fallthru
        _
      %p148 = scmp.le.s32.totalorder 1, %s10
      %p149 = scmp.lt.s32.totalorder %s10, 3
      %p150 = pnand %p148, %p149
      %p151 = pneg %p150
      // Predicated region
      $region29: #{tpu_custom_call.1} parent=5 // pred_check
        _
      $region30: #{tpu_custom_call.1} parent=5 // pred_check_branch
        %153 = sbr.rel (%p150) target = $region32
      $region31: #{tpu_custom_call.1} parent=5 // pred_region
        %s154 = ssub.s32 %s10, 1
        // Predicated region
        $region33: #{tpu_custom_call.1} parent=31 // pred_check
          %p155 = pneg %p57
        $region34: #{tpu_custom_call.1} parent=31 // pred_check_branch
          %157 = sbr.rel (%p155) target = $region36
        $region35: #{tpu_custom_call.1} parent=31 // pred_region
          %158 = dma.done [#allocation3], 4096
        $region36: #{tpu_custom_call.1} parent=31 // pred_fallthru
          _
        %s159 = smul.u32 14, %s15
        %p160 = scmp.lt.s32.totalorder %s159, 27
        %s161 = scalar_select %p160, %s159, 27
        %s162 = smul.addr %s161, 4
        %s163 = scalar_lea.vmem %s0, %s162
        %p164 = pneg %p36
        %p165 = pneg %p33
        %p166 = pneg %p57
        %p167 = pneg %p54
        %p168 = pneg %p78
        %p169 = pneg %p75
        %p170 = pneg %p104
        %p171 = pneg %p101
        %s172 = smul.u32 14, %s15
        %p173 = scmp.lt.s32.totalorder %s172, 27
        %s174 = scalar_select %p173, %s172, 27
        %s175 = smul.addr %s174, 8
        %s176 = scalar_lea.vmem %s3, %s175
        %s177 = smul.u32 14, %s15
        %p178 = scmp.lt.s32.totalorder %s177, 27
        %s179 = scalar_select %p178, %s177, 27
        %s180 = smul.addr %s179, 4
        %s181 = scalar_lea.vmem %s0, %s180
        %s182 = smul.u32 14, %s15
        %s183 = smul.u32 14, %s15
        %p184 = scmp.lt.s32.totalorder %s183, 27
        %s185 = scalar_select %p184, %s183, 27
        %s186 = smul.addr %s185, 8
        %s187 = scalar_lea.vmem %s3, %s186
        %s188 = smul.u32 14, %s15
        %v190 = vld [vmem:[%s181] sm:$0xf]
        %v191 = vld [vmem:[%s181 + $0x4] sm:$0xf]
        %v192 = vld [vmem:[%s181 + $0x8] sm:$0xf]
        %v193 = vld [vmem:[%s181 + $0xc] sm:$0xf]
        %v194 = vld [vmem:[%s181 + $0x10] sm:$0xf]
        %v195 = vld [vmem:[%s181 + $0x14] sm:$0xf]
        %v196 = vld [vmem:[%s181 + $0x18] sm:$0xf]
        %v197 = vld [vmem:[%s181 + $0x1c] sm:$0xf]
        %v198 = vld [vmem:[%s181 + $0x20] sm:$0xf]
        %v199 = vld [vmem:[%s181 + $0x24] sm:$0xf]
        %v200 = vld [vmem:[%s181 + $0x28] sm:$0xf]
        %v201 = vld [vmem:[%s181 + $0x2c] sm:$0xf]
        %v202 = vld [vmem:[%s181 + $0x30] sm:$0xf]
        %v203 = vld [vmem:[%s181 + $0x34] sm:$0xf]
        %v204 = vld [vmem:[#allocation2] sm:$0xf]
        %v205 = vld [vmem:[#allocation2 + $0x10] sm:$0xf]
        %v206 = vld [vmem:[#allocation2 + $0x20] sm:$0xf]
        %v207 = vld [vmem:[#allocation2 + $0x30] sm:$0xf]
        %v208 = vld [vmem:[%s2] sm:$0x1]
        %v210 = vlaneseq
        %v211 = vshrl.u32 %v210, 7
        %v212 = vsub.s32 0, %v211
        %v213 = vrot.slane %v208, %v212
        %v229 = vunpack.c.l.b16 %v190
        %v230 = vunpack.c.l.b16 %v191
        %v231 = vunpack.c.l.b16 %v192
        %v232 = vunpack.c.l.b16 %v193
        %v233 = vunpack.c.l.b16 %v194
        %v234 = vunpack.c.l.b16 %v195
        %v235 = vunpack.c.l.b16 %v196
        %v236 = vunpack.c.l.b16 %v197
        %v237 = vunpack.c.l.b16 %v198
        %v238 = vunpack.c.l.b16 %v199
        %v239 = vunpack.c.l.b16 %v200
        %v240 = vunpack.c.l.b16 %v201
        %v241 = vunpack.c.l.b16 %v202
        %v242 = vunpack.c.l.b16 %v203
        %v243 = vpack.c.b16 %v230, %v229
        %v244 = vpack.c.b16 %v232, %v231
        %v245 = vpack.c.b16 %v234, %v233
        %v246 = vpack.c.b16 %v236, %v235
        %v247 = vpack.c.b16 %v238, %v237
        %v248 = vpack.c.b16 %v240, %v239
        %v249 = vpack.c.b16 %v242, %v241
        %v254 = vunpack.c.l.b16 %v204
        %v255 = vunpack.c.l.b16 %v205
        %v256 = vunpack.c.l.b16 %v206
        %v257 = vunpack.c.l.b16 %v207
        %v258 = vpack.c.b16 %v255, %v254
        %v259 = vpack.c.b16 %v257, %v256
        %vm262 = vcmask 261120
        %v264 = vsel %vm262, %v243, 0
        %v267 = vsel %vm262, %v244, 0
        %v270 = vsel %vm262, %v245, 0
        %v273 = vsel %vm262, %v246, 0
        %v276 = vsel %vm262, %v247, 0
        %v279 = vsel %vm262, %v248, 0
        %v282 = vsel %vm262, %v249, 0
        %284 = vmatprep.subr.bf16.mxu0 0
        %285 = vmatpush1.bf16.msra.mxu0 %v258
        %286 = vmatprep.subr.bf16.mxu0 0
        %287 = vmatpush1.bf16.msra.mxu0 %v259
        %288 = vmatprep.subr.bf16.mxu0 0
        %289 = vmatpush1.bf16.msra.mxu0 0
        %290 = vmatprep.subr.bf16.mxu0 0
        %291 = vmatpush1.bf16.msra.mxu0 0
        %292 = vmatprep.subr.bf16.mxu0 0
        %293 = vmatpush1.bf16.msra.mxu0 0
        %294 = vmatprep.subr.bf16.mxu0 0
        %295 = vmatpush1.bf16.msra.mxu0 0
        %296 = vmatprep.subr.bf16.mxu0 0
        %297 = vmatpush1.bf16.msra.mxu0 0
        %298 = vmatprep.subr.bf16.mxu0 0
        %299 = vmatpush1.bf16.msra.mxu0 0
        %300 = vmatprep.subr.bf16.mxu0 0
        %301 = vmatpush1.bf16.msra.mxu0 0
        %302 = vmatprep.subr.bf16.mxu0 0
        %303 = vmatpush1.bf16.msra.mxu0 0
        %304 = vmatprep.subr.bf16.mxu0 0
        %305 = vmatpush1.bf16.msra.mxu0 0
        %306 = vmatprep.subr.bf16.mxu0 0
        %307 = vmatpush1.bf16.msra.mxu0 0
        %308 = vmatprep.subr.bf16.mxu0 0
        %309 = vmatpush1.bf16.msra.mxu0 0
        %310 = vmatprep.subr.bf16.mxu0 0
        %311 = vmatpush1.bf16.msra.mxu0 0
        %312 = vmatprep.subr.bf16.mxu0 0
        %313 = vmatpush1.bf16.msra.mxu0 0
        %314 = vmatprep.subr.bf16.mxu0 0
        %315 = vmatpush1.bf16.msra.mxu0 0
        %316 = vmatprep.mubr.bf16.mxu0 0
        %317 = vmatmul.mubr.bf16.gmra.mrb[0].mxu0 %v264
        %v318 = vpop.f32.mrb[0].mxu0
        %v319 = vadd.f32 %v213, %v318
        %v320 = vpop.f32.mrb[0].mxu0
        %v321 = vpop.f32.mrb[0].mxu0
        %v322 = vadd.f32 %v213, %v321
        %v323 = vpop.f32.mrb[0].mxu0
        %324 = vmatprep.mubr.bf16.mxu0 0
        %325 = vmatmul.mubr.bf16.gmra.mrb[0].mxu0 %v267
        %v326 = vpop.f32.mrb[0].mxu0
        %v327 = vadd.f32 %v213, %v326
        %v328 = vpop.f32.mrb[0].mxu0
        %v329 = vpop.f32.mrb[0].mxu0
        %v330 = vadd.f32 %v213, %v329
        %v331 = vpop.f32.mrb[0].mxu0
        %332 = vmatprep.mubr.bf16.mxu0 0
        %333 = vmatmul.mubr.bf16.gmra.mrb[0].mxu0 %v270
        %v334 = vpop.f32.mrb[0].mxu0
        %v335 = vadd.f32 %v213, %v334
        %v336 = vpop.f32.mrb[0].mxu0
        %v337 = vpop.f32.mrb[0].mxu0
        %v338 = vadd.f32 %v213, %v337
        %v339 = vpop.f32.mrb[0].mxu0
        %340 = vmatprep.mubr.bf16.mxu0 0
        %341 = vmatmul.mubr.bf16.gmra.mrb[0].mxu0 %v273
        %v342 = vpop.f32.mrb[0].mxu0
        %v343 = vadd.f32 %v213, %v342
        %v344 = vpop.f32.mrb[0].mxu0
        %v345 = vpop.f32.mrb[0].mxu0
        %v346 = vadd.f32 %v213, %v345
        %v347 = vpop.f32.mrb[0].mxu0
        %348 = vmatprep.mubr.bf16.mxu0 0
        %349 = vmatmul.mubr.bf16.gmra.mrb[0].mxu0 %v276
        %v350 = vpop.f32.mrb[0].mxu0
        %v351 = vadd.f32 %v213, %v350
        %v352 = vpop.f32.mrb[0].mxu0
        %v353 = vpop.f32.mrb[0].mxu0
        %v354 = vadd.f32 %v213, %v353
        %v355 = vpop.f32.mrb[0].mxu0
        %356 = vmatprep.mubr.bf16.mxu0 0
        %357 = vmatmul.mubr.bf16.gmra.mrb[0].mxu0 %v279
        %v358 = vpop.f32.mrb[0].mxu0
        %v359 = vadd.f32 %v213, %v358
        %v360 = vpop.f32.mrb[0].mxu0
        %v361 = vpop.f32.mrb[0].mxu0
        %v362 = vadd.f32 %v213, %v361
        %v363 = vpop.f32.mrb[0].mxu0
        %364 = vmatprep.mubr.bf16.mxu0 0
        %365 = vmatmul.mubr.bf16.gmra.mrb[0].mxu0 %v282
        %v366 = vpop.f32.mrb[0].mxu0
        %v367 = vadd.f32 %v213, %v366
        %v368 = vpop.f32.mrb[0].mxu0
        %v369 = vpop.f32.mrb[0].mxu0
        %v370 = vadd.f32 %v213, %v369
        %v371 = vpop.f32.mrb[0].mxu0
        %372 = vdwg.mxu0
        %v373 = vmax.f32 %v319, 0.0
        %v374 = vmax.f32 %v322, 0.0
        %v375 = vmax.f32 %v327, 0.0
        %v376 = vmax.f32 %v330, 0.0
        %v377 = vmax.f32 %v335, 0.0
        %v378 = vmax.f32 %v338, 0.0
        %v379 = vmax.f32 %v343, 0.0
        %v380 = vmax.f32 %v346, 0.0
        %v381 = vmax.f32 %v351, 0.0
        %v382 = vmax.f32 %v354, 0.0
        %v383 = vmax.f32 %v359, 0.0
        %v384 = vmax.f32 %v362, 0.0
        %v385 = vmax.f32 %v367, 0.0
        %v386 = vmax.f32 %v370, 0.0
        %v387 = vpack.c.bf16 %v374, %v373
        %v388 = vpack.c.bf16 %v376, %v375
        %v389 = vpack.c.bf16 %v378, %v377
        %v390 = vpack.c.bf16 %v380, %v379
        %v391 = vpack.c.bf16 %v382, %v381
        %v392 = vpack.c.bf16 %v384, %v383
        %v393 = vpack.c.bf16 %v386, %v385
        %v394 = vld [vmem:[#allocation2 + $0x4] sm:$0xf]
        %v395 = vld [vmem:[#allocation2 + $0x14] sm:$0xf]
        %v396 = vld [vmem:[#allocation2 + $0x24] sm:$0xf]
        %v397 = vld [vmem:[#allocation2 + $0x34] sm:$0xf]
        %v398 = vld [vmem:[#allocation2 + $0x44] sm:$0xf]
        %v399 = vld [vmem:[#allocation2 + $0x54] sm:$0xf]
        %v400 = vld [vmem:[#allocation2 + $0x64] sm:$0xf]
        %v401 = vld [vmem:[#allocation2 + $0x74] sm:$0xf]
        %v402 = vld [vmem:[#allocation2 + $0x84] sm:$0xf]
        %v403 = vld [vmem:[#allocation2 + $0x94] sm:$0xf]
        %v404 = vld [vmem:[#allocation2 + $0xa4] sm:$0xf]
        %v405 = vld [vmem:[#allocation2 + $0xb4] sm:$0xf]
        %v406 = vld [vmem:[#allocation2 + $0xc4] sm:$0xf]
        %v407 = vld [vmem:[#allocation2 + $0xd4] sm:$0xf]
        %v408 = vld [vmem:[#allocation2 + $0xe4] sm:$0xf]
        %v409 = vld [vmem:[#allocation2 + $0xf4] sm:$0xf]
        %v410 = vld [vmem:[%s2 + $0x1] sm:$0x1]
        %v412 = vlaneseq
        %v413 = vshrl.u32 %v412, 7
        %v414 = vsub.s32 0, %v413
        %v415 = vrot.slane %v410, %v414
        %v433 = vunpack.c.l.b16 %v394
        %v434 = vunpack.c.l.b16 %v395
        %v435 = vunpack.c.l.b16 %v396
        %v436 = vunpack.c.l.b16 %v397
        %v437 = vunpack.c.l.b16 %v398
        %v438 = vunpack.c.l.b16 %v399
        %v439 = vunpack.c.l.b16 %v400
        %v440 = vunpack.c.l.b16 %v401
        %v441 = vunpack.c.l.b16 %v402
        %v442 = vunpack.c.l.b16 %v403
        %v443 = vunpack.c.l.b16 %v404
        %v444 = vunpack.c.l.b16 %v405
        %v445 = vunpack.c.l.b16 %v406
        %v446 = vunpack.c.l.b16 %v407
        %v447 = vunpack.c.l.b16 %v408
        %v448 = vunpack.c.l.b16 %v409
        %v449 = vpack.c.b16 %v434, %v433
        %v450 = vpack.c.b16 %v436, %v435
        %v451 = vpack.c.b16 %v438, %v437
        %v452 = vpack.c.b16 %v440, %v439
        %v453 = vpack.c.b16 %v442, %v441
        %v454 = vpack.c.b16 %v444, %v443
        %v455 = vpack.c.b16 %v446, %v445
        %v456 = vpack.c.b16 %v448, %v447
        %465 = vmatprep.subr.bf16.mxu0 0
        %466 = vmatpush1.bf16.msra.mxu0 %v449
        %467 = vmatprep.subr.bf16.mxu0 0
        %468 = vmatpush1.bf16.msra.mxu0 %v450
        %469 = vmatprep.subr.bf16.mxu0 0
        %470 = vmatpush1.bf16.msra.mxu0 %v451
        %471 = vmatprep.subr.bf16.mxu0 0
        %472 = vmatpush1.bf16.msra.mxu0 %v452
        %473 = vmatprep.subr.bf16.mxu0 0
        %474 = vmatpush1.bf16.msra.mxu0 %v453
        %475 = vmatprep.subr.bf16.mxu0 0
        %476 = vmatpush1.bf16.msra.mxu0 %v454
        %477 = vmatprep.subr.bf16.mxu0 0
        %478 = vmatpush1.bf16.msra.mxu0 %v455
        %479 = vmatprep.subr.bf16.mxu0 0
        %480 = vmatpush1.bf16.msra.mxu0 %v456
        %481 = vmatprep.subr.bf16.mxu0 0
        %482 = vmatpush1.bf16.msra.mxu0 0
        %483 = vmatprep.subr.bf16.mxu0 0
        %484 = vmatpush1.bf16.msra.mxu0 0
        %485 = vmatprep.subr.bf16.mxu0 0
        %486 = vmatpush1.bf16.msra.mxu0 0
        %487 = vmatprep.subr.bf16.mxu0 0
        %488 = vmatpush1.bf16.msra.mxu0 0
        %489 = vmatprep.subr.bf16.mxu0 0
        %490 = vmatpush1.bf16.msra.mxu0 0
        %491 = vmatprep.subr.bf16.mxu0 0
        %492 = vmatpush1.bf16.msra.mxu0 0
        %493 = vmatprep.subr.bf16.mxu0 0
        %494 = vmatpush1.bf16.msra.mxu0 0
        %495 = vmatprep.subr.bf16.mxu0 0
        %496 = vmatpush1.bf16.msra.mxu0 0
        %497 = vmatprep.mubr.bf16.mxu0 0
        %498 = vmatmul.mubr.bf16.gmra.mrb[0].mxu0 %v387
        %v499 = vpop.f32.mrb[0].mxu0
        %v500 = vadd.f32 %v415, %v499
        %v501 = vpop.f32.mrb[0].mxu0
        %v502 = vpop.f32.mrb[0].mxu0
        %v503 = vadd.f32 %v415, %v502
        %v504 = vpop.f32.mrb[0].mxu0
        %505 = vmatprep.mubr.bf16.mxu0 0
        %506 = vmatmul.mubr.bf16.gmra.mrb[0].mxu0 %v388
        %v507 = vpop.f32.mrb[0].mxu0
        %v508 = vadd.f32 %v415, %v507
        %v509 = vpop.f32.mrb[0].mxu0
        %v510 = vpop.f32.mrb[0].mxu0
        %v511 = vadd.f32 %v415, %v510
        %v512 = vpop.f32.mrb[0].mxu0
        %513 = vmatprep.mubr.bf16.mxu0 0
        %514 = vmatmul.mubr.bf16.gmra.mrb[0].mxu0 %v389
        %v515 = vpop.f32.mrb[0].mxu0
        %v516 = vadd.f32 %v415, %v515
        %v517 = vpop.f32.mrb[0].mxu0
        %v518 = vpop.f32.mrb[0].mxu0
        %v519 = vadd.f32 %v415, %v518
        %v520 = vpop.f32.mrb[0].mxu0
        %521 = vmatprep.mubr.bf16.mxu0 0
        %522 = vmatmul.mubr.bf16.gmra.mrb[0].mxu0 %v390
        %v523 = vpop.f32.mrb[0].mxu0
        %v524 = vadd.f32 %v415, %v523
        %v525 = vpop.f32.mrb[0].mxu0
        %v526 = vpop.f32.mrb[0].mxu0
        %v527 = vadd.f32 %v415, %v526
        %v528 = vpop.f32.mrb[0].mxu0
        %529 = vmatprep.mubr.bf16.mxu0 0
        %530 = vmatmul.mubr.bf16.gmra.mrb[0].mxu0 %v391
        %v531 = vpop.f32.mrb[0].mxu0
        %v532 = vadd.f32 %v415, %v531
        %v533 = vpop.f32.mrb[0].mxu0
        %v534 = vpop.f32.mrb[0].mxu0
        %v535 = vadd.f32 %v415, %v534
        %v536 = vpop.f32.mrb[0].mxu0
        %537 = vmatprep.mubr.bf16.mxu0 0
        %538 = vmatmul.mubr.bf16.gmra.mrb[0].mxu0 %v392
        %v539 = vpop.f32.mrb[0].mxu0
        %v540 = vadd.f32 %v415, %v539
        %v541 = vpop.f32.mrb[0].mxu0
        %v542 = vpop.f32.mrb[0].mxu0
        %v543 = vadd.f32 %v415, %v542
        %v544 = vpop.f32.mrb[0].mxu0
        %545 = vmatprep.mubr.bf16.mxu0 0
        %546 = vmatmul.mubr.bf16.gmra.mrb[0].mxu0 %v393
        %v547 = vpop.f32.mrb[0].mxu0
        %v548 = vadd.f32 %v415, %v547
        %v549 = vpop.f32.mrb[0].mxu0
        %v550 = vpop.f32.mrb[0].mxu0
        %v551 = vadd.f32 %v415, %v550
        %v552 = vpop.f32.mrb[0].mxu0
        %553 = vdwg.mxu0
        %v554 = vmax.f32 %v500, 0.0
        %v555 = vmax.f32 %v503, 0.0
        %v556 = vmax.f32 %v508, 0.0
        %v557 = vmax.f32 %v511, 0.0
        %v558 = vmax.f32 %v516, 0.0
        %v559 = vmax.f32 %v519, 0.0
        %v560 = vmax.f32 %v524, 0.0
        %v561 = vmax.f32 %v527, 0.0
        %v562 = vmax.f32 %v532, 0.0
        %v563 = vmax.f32 %v535, 0.0
        %v564 = vmax.f32 %v540, 0.0
        %v565 = vmax.f32 %v543, 0.0
        %v566 = vmax.f32 %v548, 0.0
        %v567 = vmax.f32 %v551, 0.0
        %v568 = vpack.c.bf16 %v555, %v554
        %v569 = vpack.c.bf16 %v557, %v556
        %v570 = vpack.c.bf16 %v559, %v558
        %v571 = vpack.c.bf16 %v561, %v560
        %v572 = vpack.c.bf16 %v563, %v562
        %v573 = vpack.c.bf16 %v565, %v564
        %v574 = vpack.c.bf16 %v567, %v566
        %v575 = vld [vmem:[#allocation2 + $0x8] sm:$0xf]
        %v576 = vld [vmem:[#allocation2 + $0x18] sm:$0xf]
        %v577 = vld [vmem:[#allocation2 + $0x28] sm:$0xf]
        %v578 = vld [vmem:[#allocation2 + $0x38] sm:$0xf]
        %v579 = vld [vmem:[#allocation2 + $0x48] sm:$0xf]
        %v580 = vld [vmem:[#allocation2 + $0x58] sm:$0xf]
        %v581 = vld [vmem:[#allocation2 + $0x68] sm:$0xf]
        %v582 = vld [vmem:[#allocation2 + $0x78] sm:$0xf]
        %v583 = vld [vmem:[#allocation2 + $0x88] sm:$0xf]
        %v584 = vld [vmem:[#allocation2 + $0x98] sm:$0xf]
        %v585 = vld [vmem:[#allocation2 + $0xa8] sm:$0xf]
        %v586 = vld [vmem:[#allocation2 + $0xb8] sm:$0xf]
        %v587 = vld [vmem:[#allocation2 + $0xc8] sm:$0xf]
        %v588 = vld [vmem:[#allocation2 + $0xd8] sm:$0xf]
        %v589 = vld [vmem:[#allocation2 + $0xe8] sm:$0xf]
        %v590 = vld [vmem:[#allocation2 + $0xf8] sm:$0xf]
        %v591 = vld [vmem:[%s2 + $0x2] sm:$0x1]
        %v593 = vlaneseq
        %v594 = vshrl.u32 %v593, 7
        %v595 = vsub.s32 0, %v594
        %v596 = vrot.slane %v591, %v595
        %v614 = vunpack.c.l.b16 %v575
        %v615 = vunpack.c.l.b16 %v576
        %v616 = vunpack.c.l.b16 %v577
        %v617 = vunpack.c.l.b16 %v578
        %v618 = vunpack.c.l.b16 %v579
        %v619 = vunpack.c.l.b16 %v580
        %v620 = vunpack.c.l.b16 %v581
        %v621 = vunpack.c.l.b16 %v582
        %v622 = vunpack.c.l.b16 %v583
        %v623 = vunpack.c.l.b16 %v584
        %v624 = vunpack.c.l.b16 %v585
        %v625 = vunpack.c.l.b16 %v586
        %v626 = vunpack.c.l.b16 %v587
        %v627 = vunpack.c.l.b16 %v588
        %v628 = vunpack.c.l.b16 %v589
        %v629 = vunpack.c.l.b16 %v590
        %v630 = vpack.c.b16 %v615, %v614
        %v631 = vpack.c.b16 %v617, %v616
        %v632 = vpack.c.b16 %v619, %v618
        %v633 = vpack.c.b16 %v621, %v620
        %v634 = vpack.c.b16 %v623, %v622
        %v635 = vpack.c.b16 %v625, %v624
        %v636 = vpack.c.b16 %v627, %v626
        %v637 = vpack.c.b16 %v629, %v628
        %646 = vmatprep.subr.bf16.mxu0 0
        %647 = vmatpush1.bf16.msra.mxu0 %v630
        %648 = vmatprep.subr.bf16.mxu0 0
        %649 = vmatpush1.bf16.msra.mxu0 %v631
        %650 = vmatprep.subr.bf16.mxu0 0
        %651 = vmatpush1.bf16.msra.mxu0 %v632
        %652 = vmatprep.subr.bf16.mxu0 0
        %653 = vmatpush1.bf16.msra.mxu0 %v633
        %654 = vmatprep.subr.bf16.mxu0 0
        %655 = vmatpush1.bf16.msra.mxu0 %v634
        %656 = vmatprep.subr.bf16.mxu0 0
        %657 = vmatpush1.bf16.msra.mxu0 %v635
        %658 = vmatprep.subr.bf16.mxu0 0
        %659 = vmatpush1.bf16.msra.mxu0 %v636
        %660 = vmatprep.subr.bf16.mxu0 0
        %661 = vmatpush1.bf16.msra.mxu0 %v637
        %662 = vmatprep.subr.bf16.mxu0 0
        %663 = vmatpush1.bf16.msra.mxu0 0
        %664 = vmatprep.subr.bf16.mxu0 0
        %665 = vmatpush1.bf16.msra.mxu0 0
        %666 = vmatprep.subr.bf16.mxu0 0
        %667 = vmatpush1.bf16.msra.mxu0 0
        %668 = vmatprep.subr.bf16.mxu0 0
        %669 = vmatpush1.bf16.msra.mxu0 0
        %670 = vmatprep.subr.bf16.mxu0 0
        %671 = vmatpush1.bf16.msra.mxu0 0
        %672 = vmatprep.subr.bf16.mxu0 0
        %673 = vmatpush1.bf16.msra.mxu0 0
        %674 = vmatprep.subr.bf16.mxu0 0
        %675 = vmatpush1.bf16.msra.mxu0 0
        %676 = vmatprep.subr.bf16.mxu0 0
        %677 = vmatpush1.bf16.msra.mxu0 0
        %678 = vmatprep.mubr.bf16.mxu0 0
        %679 = vmatmul.mubr.bf16.gmra.mrb[0].mxu0 %v568
        %v680 = vpop.f32.mrb[0].mxu0
        %v681 = vadd.f32 %v596, %v680
        %v682 = vpop.f32.mrb[0].mxu0
        %v683 = vpop.f32.mrb[0].mxu0
        %v684 = vadd.f32 %v596, %v683
        %v685 = vpop.f32.mrb[0].mxu0
        %686 = vmatprep.mubr.bf16.mxu0 0
        %687 = vmatmul.mubr.bf16.gmra.mrb[0].mxu0 %v569
        %v688 = vpop.f32.mrb[0].mxu0
        %v689 = vadd.f32 %v596, %v688
        %v690 = vpop.f32.mrb[0].mxu0
        %v691 = vpop.f32.mrb[0].mxu0
        %v692 = vadd.f32 %v596, %v691
        %v693 = vpop.f32.mrb[0].mxu0
        %694 = vmatprep.mubr.bf16.mxu0 0
        %695 = vmatmul.mubr.bf16.gmra.mrb[0].mxu0 %v570
        %v696 = vpop.f32.mrb[0].mxu0
        %v697 = vadd.f32 %v596, %v696
        %v698 = vpop.f32.mrb[0].mxu0
        %v699 = vpop.f32.mrb[0].mxu0
        %v700 = vadd.f32 %v596, %v699
        %v701 = vpop.f32.mrb[0].mxu0
        %702 = vmatprep.mubr.bf16.mxu0 0
        %703 = vmatmul.mubr.bf16.gmra.mrb[0].mxu0 %v571
        %v704 = vpop.f32.mrb[0].mxu0
        %v705 = vadd.f32 %v596, %v704
        %v706 = vpop.f32.mrb[0].mxu0
        %v707 = vpop.f32.mrb[0].mxu0
        %v708 = vadd.f32 %v596, %v707
        %v709 = vpop.f32.mrb[0].mxu0
        %710 = vmatprep.mubr.bf16.mxu0 0
        %711 = vmatmul.mubr.bf16.gmra.mrb[0].mxu0 %v572
        %v712 = vpop.f32.mrb[0].mxu0
        %v713 = vadd.f32 %v596, %v712
        %v714 = vpop.f32.mrb[0].mxu0
        %v715 = vpop.f32.mrb[0].mxu0
        %v716 = vadd.f32 %v596, %v715
        %v717 = vpop.f32.mrb[0].mxu0
        %718 = vmatprep.mubr.bf16.mxu0 0
        %719 = vmatmul.mubr.bf16.gmra.mrb[0].mxu0 %v573
        %v720 = vpop.f32.mrb[0].mxu0
        %v721 = vadd.f32 %v596, %v720
        %v722 = vpop.f32.mrb[0].mxu0
        %v723 = vpop.f32.mrb[0].mxu0
        %v724 = vadd.f32 %v596, %v723
        %v725 = vpop.f32.mrb[0].mxu0
        %726 = vmatprep.mubr.bf16.mxu0 0
        %727 = vmatmul.mubr.bf16.gmra.mrb[0].mxu0 %v574
        %v728 = vpop.f32.mrb[0].mxu0
        %v729 = vadd.f32 %v596, %v728
        %v730 = vpop.f32.mrb[0].mxu0
        %v731 = vpop.f32.mrb[0].mxu0
        %v732 = vadd.f32 %v596, %v731
        %v733 = vpop.f32.mrb[0].mxu0
        %734 = vdwg.mxu0
        %v735 = vmax.f32 %v681, 0.0
        %v736 = vmax.f32 %v684, 0.0
        %v737 = vmax.f32 %v689, 0.0
        %v738 = vmax.f32 %v692, 0.0
        %v739 = vmax.f32 %v697, 0.0
        %v740 = vmax.f32 %v700, 0.0
        %v741 = vmax.f32 %v705, 0.0
        %v742 = vmax.f32 %v708, 0.0
        %v743 = vmax.f32 %v713, 0.0
        %v744 = vmax.f32 %v716, 0.0
        %v745 = vmax.f32 %v721, 0.0
        %v746 = vmax.f32 %v724, 0.0
        %v747 = vmax.f32 %v729, 0.0
        %v748 = vmax.f32 %v732, 0.0
        %v749 = vpack.c.bf16 %v736, %v735
        %v750 = vpack.c.bf16 %v738, %v737
        %v751 = vpack.c.bf16 %v740, %v739
        %v752 = vpack.c.bf16 %v742, %v741
        %v753 = vpack.c.bf16 %v744, %v743
        %v754 = vpack.c.bf16 %v746, %v745
        %v755 = vpack.c.bf16 %v748, %v747
        %v756 = vld [vmem:[#allocation2 + $0xc] sm:$0xf]
        %v757 = vld [vmem:[#allocation2 + $0x1c] sm:$0xf]
        %v758 = vld [vmem:[#allocation2 + $0x2c] sm:$0xf]
        %v759 = vld [vmem:[#allocation2 + $0x3c] sm:$0xf]
        %v760 = vld [vmem:[#allocation2 + $0x4c] sm:$0xf]
        %v761 = vld [vmem:[#allocation2 + $0x5c] sm:$0xf]
        %v762 = vld [vmem:[#allocation2 + $0x6c] sm:$0xf]
        %v763 = vld [vmem:[#allocation2 + $0x7c] sm:$0xf]
        %v764 = vld [vmem:[#allocation2 + $0x8c] sm:$0xf]
        %v765 = vld [vmem:[#allocation2 + $0x9c] sm:$0xf]
        %v766 = vld [vmem:[#allocation2 + $0xac] sm:$0xf]
        %v767 = vld [vmem:[#allocation2 + $0xbc] sm:$0xf]
        %v768 = vld [vmem:[#allocation2 + $0xcc] sm:$0xf]
        %v769 = vld [vmem:[#allocation2 + $0xdc] sm:$0xf]
        %v770 = vld [vmem:[#allocation2 + $0xec] sm:$0xf]
        %v771 = vld [vmem:[#allocation2 + $0xfc] sm:$0xf]
        %v788 = vunpack.c.l.b16 %v756
        %v789 = vunpack.c.l.b16 %v757
        %v790 = vunpack.c.l.b16 %v758
        %v791 = vunpack.c.l.b16 %v759
        %v792 = vunpack.c.l.b16 %v760
        %v793 = vunpack.c.l.b16 %v761
        %v794 = vunpack.c.l.b16 %v762
        %v795 = vunpack.c.l.b16 %v763
        %v796 = vunpack.c.l.b16 %v764
        %v797 = vunpack.c.l.b16 %v765
        %v798 = vunpack.c.l.b16 %v766
        %v799 = vunpack.c.l.b16 %v767
        %v800 = vunpack.c.l.b16 %v768
        %v801 = vunpack.c.l.b16 %v769
        %v802 = vunpack.c.l.b16 %v770
        %v803 = vunpack.c.l.b16 %v771
        %v804 = vpack.c.b16 %v789, %v788
        %v805 = vpack.c.b16 %v791, %v790
        %v806 = vpack.c.b16 %v793, %v792
        %v807 = vpack.c.b16 %v795, %v794
        %v808 = vpack.c.b16 %v797, %v796
        %v809 = vpack.c.b16 %v799, %v798
        %v810 = vpack.c.b16 %v801, %v800
        %v811 = vpack.c.b16 %v803, %v802
        %820 = vmatprep.subr.bf16.mxu0 0
        %821 = vmatpush1.bf16.msra.mxu0 %v804
        %822 = vmatprep.subr.bf16.mxu0 0
        %823 = vmatpush1.bf16.msra.mxu0 %v805
        %824 = vmatprep.subr.bf16.mxu0 0
        %825 = vmatpush1.bf16.msra.mxu0 %v806
        %826 = vmatprep.subr.bf16.mxu0 0
        %827 = vmatpush1.bf16.msra.mxu0 %v807
        %828 = vmatprep.subr.bf16.mxu0 0
        %829 = vmatpush1.bf16.msra.mxu0 %v808
        %830 = vmatprep.subr.bf16.mxu0 0
        %831 = vmatpush1.bf16.msra.mxu0 %v809
        %832 = vmatprep.subr.bf16.mxu0 0
        %833 = vmatpush1.bf16.msra.mxu0 %v810
        %834 = vmatprep.subr.bf16.mxu0 0
        %835 = vmatpush1.bf16.msra.mxu0 %v811
        %836 = vmatprep.subr.bf16.mxu0 0
        %837 = vmatpush1.bf16.msra.mxu0 0
        %838 = vmatprep.subr.bf16.mxu0 0
        %839 = vmatpush1.bf16.msra.mxu0 0
        %840 = vmatprep.subr.bf16.mxu0 0
        %841 = vmatpush1.bf16.msra.mxu0 0
        %842 = vmatprep.subr.bf16.mxu0 0
        %843 = vmatpush1.bf16.msra.mxu0 0
        %844 = vmatprep.subr.bf16.mxu0 0
        %845 = vmatpush1.bf16.msra.mxu0 0
        %846 = vmatprep.subr.bf16.mxu0 0
        %847 = vmatpush1.bf16.msra.mxu0 0
        %848 = vmatprep.subr.bf16.mxu0 0
        %849 = vmatpush1.bf16.msra.mxu0 0
        %850 = vmatprep.subr.bf16.mxu0 0
        %851 = vmatpush1.bf16.msra.mxu0 0
        %852 = vmatprep.mubr.bf16.mxu0 0
        %853 = vmatmul.mubr.bf16.gmra.mrb[0].mxu0 %v749
        %v854 = vpop.f32.mrb[0].mxu0
        %v855 = vadd.f32 0.0, %v854
        %v856 = vpop.f32.mrb[0].mxu0
        %v857 = vpop.f32.mrb[0].mxu0
        %v858 = vadd.f32 0.0, %v857
        %v859 = vpop.f32.mrb[0].mxu0
        %860 = vmatprep.mubr.bf16.mxu0 0
        %861 = vmatmul.mubr.bf16.gmra.mrb[0].mxu0 %v750
        %v862 = vpop.f32.mrb[0].mxu0
        %v863 = vadd.f32 0.0, %v862
        %v864 = vpop.f32.mrb[0].mxu0
        %v865 = vpop.f32.mrb[0].mxu0
        %v866 = vadd.f32 0.0, %v865
        %v867 = vpop.f32.mrb[0].mxu0
        %868 = vmatprep.mubr.bf16.mxu0 0
        %869 = vmatmul.mubr.bf16.gmra.mrb[0].mxu0 %v751
        %v870 = vpop.f32.mrb[0].mxu0
        %v871 = vadd.f32 0.0, %v870
        %v872 = vpop.f32.mrb[0].mxu0
        %v873 = vpop.f32.mrb[0].mxu0
        %v874 = vadd.f32 0.0, %v873
        %v875 = vpop.f32.mrb[0].mxu0
        %876 = vmatprep.mubr.bf16.mxu0 0
        %877 = vmatmul.mubr.bf16.gmra.mrb[0].mxu0 %v752
        %v878 = vpop.f32.mrb[0].mxu0
        %v879 = vadd.f32 0.0, %v878
        %v880 = vpop.f32.mrb[0].mxu0
        %v881 = vpop.f32.mrb[0].mxu0
        %v882 = vadd.f32 0.0, %v881
        %v883 = vpop.f32.mrb[0].mxu0
        %884 = vmatprep.mubr.bf16.mxu0 0
        %885 = vmatmul.mubr.bf16.gmra.mrb[0].mxu0 %v753
        %v886 = vpop.f32.mrb[0].mxu0
        %v887 = vadd.f32 0.0, %v886
        %v888 = vpop.f32.mrb[0].mxu0
        %v889 = vpop.f32.mrb[0].mxu0
        %v890 = vadd.f32 0.0, %v889
        %v891 = vpop.f32.mrb[0].mxu0
        %892 = vmatprep.mubr.bf16.mxu0 0
        %893 = vmatmul.mubr.bf16.gmra.mrb[0].mxu0 %v754
        %v894 = vpop.f32.mrb[0].mxu0
        %v895 = vadd.f32 0.0, %v894
        %v896 = vpop.f32.mrb[0].mxu0
        %v897 = vpop.f32.mrb[0].mxu0
        %v898 = vadd.f32 0.0, %v897
        %v899 = vpop.f32.mrb[0].mxu0
        %900 = vmatprep.mubr.bf16.mxu0 0
        %901 = vmatmul.mubr.bf16.gmra.mrb[0].mxu0 %v755
        %v902 = vpop.f32.mrb[0].mxu0
        %v903 = vadd.f32 0.0, %v902
        %v904 = vpop.f32.mrb[0].mxu0
        %v905 = vpop.f32.mrb[0].mxu0
        %v906 = vadd.f32 0.0, %v905
        %v907 = vpop.f32.mrb[0].mxu0
        %908 = vdwg.mxu0
        %v909 = vld [vmem:[%s2 + $0x3] sm:$0x1]
        %v911 = vlaneseq
        %v912 = vshrl.u32 %v911, 7
        %v913 = vsub.s32 0, %v912
        %v914 = vrot.slane %v909, %v913
        %v916 = vadd.f32 %v855, %v914
        %v917 = vadd.f32 %v858, %v914
        %v918 = vadd.f32 %v863, %v914
        %v919 = vadd.f32 %v866, %v914
        %v920 = vadd.f32 %v871, %v914
        %v921 = vadd.f32 %v874, %v914
        %v922 = vadd.f32 %v879, %v914
        %v923 = vadd.f32 %v882, %v914
        %v924 = vadd.f32 %v887, %v914
        %v925 = vadd.f32 %v890, %v914
        %v926 = vadd.f32 %v895, %v914
        %v927 = vadd.f32 %v898, %v914
        %v928 = vadd.f32 %v903, %v914
        %v929 = vadd.f32 %v906, %v914
        %vm930 = vcmask 31744
        %v931 = vsel %vm930, %v916, -inf
        %932 = vmax.xlane.f32.xlu0 %v931
        %v933 = vpop.xlane.xlu0 %932
        %v934 = vsel %vm930, %v917, -inf
        %935 = vmax.xlane.f32.xlu0 %v934
        %v936 = vpop.xlane.xlu0 %935
        %v937 = vsel %vm930, %v918, -inf
        %938 = vmax.xlane.f32.xlu0 %v937
        %v939 = vpop.xlane.xlu0 %938
        %v940 = vsel %vm930, %v919, -inf
        %941 = vmax.xlane.f32.xlu0 %v940
        %v942 = vpop.xlane.xlu0 %941
        %v943 = vsel %vm930, %v920, -inf
        %944 = vmax.xlane.f32.xlu0 %v943
        %v945 = vpop.xlane.xlu0 %944
        %v946 = vsel %vm930, %v921, -inf
        %947 = vmax.xlane.f32.xlu0 %v946
        %v948 = vpop.xlane.xlu0 %947
        %v949 = vsel %vm930, %v922, -inf
        %950 = vmax.xlane.f32.xlu0 %v949
        %v951 = vpop.xlane.xlu0 %950
        %v952 = vsel %vm930, %v923, -inf
        %953 = vmax.xlane.f32.xlu0 %v952
        %v954 = vpop.xlane.xlu0 %953
        %v955 = vsel %vm930, %v924, -inf
        %956 = vmax.xlane.f32.xlu0 %v955
        %v957 = vpop.xlane.xlu0 %956
        %v958 = vsel %vm930, %v925, -inf
        %959 = vmax.xlane.f32.xlu0 %v958
        %v960 = vpop.xlane.xlu0 %959
        %v961 = vsel %vm930, %v926, -inf
        %962 = vmax.xlane.f32.xlu0 %v961
        %v963 = vpop.xlane.xlu0 %962
        %v964 = vsel %vm930, %v927, -inf
        %965 = vmax.xlane.f32.xlu0 %v964
        %v966 = vpop.xlane.xlu0 %965
        %v967 = vsel %vm930, %v928, -inf
        %968 = vmax.xlane.f32.xlu0 %v967
        %v969 = vpop.xlane.xlu0 %968
        %v970 = vsel %vm930, %v929, -inf
        %971 = vmax.xlane.f32.xlu0 %v970
        %v972 = vpop.xlane.xlu0 %971
        %v973 = vsub.f32 %v916, %v933
        %v974 = vsub.f32 %v917, %v936
        %v975 = vsub.f32 %v918, %v939
        %v976 = vsub.f32 %v919, %v942
        %v977 = vsub.f32 %v920, %v945
        %v978 = vsub.f32 %v921, %v948
        %v979 = vsub.f32 %v922, %v951
        %v980 = vsub.f32 %v923, %v954
        %v981 = vsub.f32 %v924, %v957
        %v982 = vsub.f32 %v925, %v960
        %v983 = vsub.f32 %v926, %v963
        %v984 = vsub.f32 %v927, %v966
        %v985 = vsub.f32 %v928, %v969
        %v986 = vsub.f32 %v929, %v972
        %v987 = vmul.f32 %v973, 1.442695
        %v988 = vpow.pop %v987
        %v989 = vmul.f32 %v974, 1.442695
        %v990 = vpow.pop %v989
        %v991 = vmul.f32 %v975, 1.442695
        %v992 = vpow.pop %v991
        %v993 = vmul.f32 %v976, 1.442695
        %v994 = vpow.pop %v993
        %v995 = vmul.f32 %v977, 1.442695
        %v996 = vpow.pop %v995
        %v997 = vmul.f32 %v978, 1.442695
        %v998 = vpow.pop %v997
        %v999 = vmul.f32 %v979, 1.442695
        %v1000 = vpow.pop %v999
        %v1001 = vmul.f32 %v980, 1.442695
        %v1002 = vpow.pop %v1001
        %v1003 = vmul.f32 %v981, 1.442695
        %v1004 = vpow.pop %v1003
        %v1005 = vmul.f32 %v982, 1.442695
        %v1006 = vpow.pop %v1005
        %v1007 = vmul.f32 %v983, 1.442695
        %v1008 = vpow.pop %v1007
        %v1009 = vmul.f32 %v984, 1.442695
        %v1010 = vpow.pop %v1009
        %v1011 = vmul.f32 %v985, 1.442695
        %v1012 = vpow.pop %v1011
        %v1013 = vmul.f32 %v986, 1.442695
        %v1014 = vpow.pop %v1013
        %v1015 = vsel %vm930, %v988, 0.0
        %1016 = vadd.xlane.f32.xlu0 %v1015
        %v1017 = vpop.xlane.xlu0 %1016
        %v1018 = vsel %vm930, %v990, 0.0
        %1019 = vadd.xlane.f32.xlu0 %v1018
        %v1020 = vpop.xlane.xlu0 %1019
        %v1021 = vsel %vm930, %v992, 0.0
        %1022 = vadd.xlane.f32.xlu0 %v1021
        %v1023 = vpop.xlane.xlu0 %1022
        %v1024 = vsel %vm930, %v994, 0.0
        %1025 = vadd.xlane.f32.xlu0 %v1024
        %v1026 = vpop.xlane.xlu0 %1025
        %v1027 = vsel %vm930, %v996, 0.0
        %1028 = vadd.xlane.f32.xlu0 %v1027
        %v1029 = vpop.xlane.xlu0 %1028
        %v1030 = vsel %vm930, %v998, 0.0
        %1031 = vadd.xlane.f32.xlu0 %v1030
        %v1032 = vpop.xlane.xlu0 %1031
        %v1033 = vsel %vm930, %v1000, 0.0
        %1034 = vadd.xlane.f32.xlu0 %v1033
        %v1035 = vpop.xlane.xlu0 %1034
        %v1036 = vsel %vm930, %v1002, 0.0
        %1037 = vadd.xlane.f32.xlu0 %v1036
        %v1038 = vpop.xlane.xlu0 %1037
        %v1039 = vsel %vm930, %v1004, 0.0
        %1040 = vadd.xlane.f32.xlu0 %v1039
        %v1041 = vpop.xlane.xlu0 %1040
        %v1042 = vsel %vm930, %v1006, 0.0
        %1043 = vadd.xlane.f32.xlu0 %v1042
        %v1044 = vpop.xlane.xlu0 %1043
        %v1045 = vsel %vm930, %v1008, 0.0
        %1046 = vadd.xlane.f32.xlu0 %v1045
        %v1047 = vpop.xlane.xlu0 %1046
        %v1048 = vsel %vm930, %v1010, 0.0
        %1049 = vadd.xlane.f32.xlu0 %v1048
        %v1050 = vpop.xlane.xlu0 %1049
        %v1051 = vsel %vm930, %v1012, 0.0
        %1052 = vadd.xlane.f32.xlu0 %v1051
        %v1053 = vpop.xlane.xlu0 %1052
        %v1054 = vsel %vm930, %v1014, 0.0
        %1055 = vadd.xlane.f32.xlu0 %v1054
        %v1056 = vpop.xlane.xlu0 %1055
        %v1057 = vrcp.pop %v1017
        %v1058 = vmul.f32 %v988, %v1057
        %v1059 = vrcp.pop %v1020
        %v1060 = vmul.f32 %v990, %v1059
        %v1061 = vrcp.pop %v1023
        %v1062 = vmul.f32 %v992, %v1061
        %v1063 = vrcp.pop %v1026
        %v1064 = vmul.f32 %v994, %v1063
        %v1065 = vrcp.pop %v1029
        %v1066 = vmul.f32 %v996, %v1065
        %v1067 = vrcp.pop %v1032
        %v1068 = vmul.f32 %v998, %v1067
        %v1069 = vrcp.pop %v1035
        %v1070 = vmul.f32 %v1000, %v1069
        %v1071 = vrcp.pop %v1038
        %v1072 = vmul.f32 %v1002, %v1071
        %v1073 = vrcp.pop %v1041
        %v1074 = vmul.f32 %v1004, %v1073
        %v1075 = vrcp.pop %v1044
        %v1076 = vmul.f32 %v1006, %v1075
        %v1077 = vrcp.pop %v1047
        %v1078 = vmul.f32 %v1008, %v1077
        %v1079 = vrcp.pop %v1050
        %v1080 = vmul.f32 %v1010, %v1079
        %v1081 = vrcp.pop %v1053
        %v1082 = vmul.f32 %v1012, %v1081
        %v1083 = vrcp.pop %v1056
        %v1084 = vmul.f32 %v1014, %v1083
        %1085 = vst.msk [vmem:[%s187] sm:$0xff] %vm930, %v1058
        %1086 = vst.msk [vmem:[%s187 + $0x8] sm:$0xff] %vm930, %v1060
        %1087 = vst.msk [vmem:[%s187 + $0x10] sm:$0xff] %vm930, %v1062
        %1088 = vst.msk [vmem:[%s187 + $0x18] sm:$0xff] %vm930, %v1064
        %1089 = vst.msk [vmem:[%s187 + $0x20] sm:$0xff] %vm930, %v1066
        %1090 = vst.msk [vmem:[%s187 + $0x28] sm:$0xff] %vm930, %v1068
        %1091 = vst.msk [vmem:[%s187 + $0x30] sm:$0xff] %vm930, %v1070
        %1092 = vst.msk [vmem:[%s187 + $0x38] sm:$0xff] %vm930, %v1072
        %1093 = vst.msk [vmem:[%s187 + $0x40] sm:$0xff] %vm930, %v1074
        %1094 = vst.msk [vmem:[%s187 + $0x48] sm:$0xff] %vm930, %v1076
        %1095 = vst.msk [vmem:[%s187 + $0x50] sm:$0xff] %vm930, %v1078
        %1096 = vst.msk [vmem:[%s187 + $0x58] sm:$0xff] %vm930, %v1080
        %1097 = vst.msk [vmem:[%s187 + $0x60] sm:$0xff] %vm930, %v1082
        %1098 = vst.msk [vmem:[%s187 + $0x68] sm:$0xff] %vm930, %v1084
        %s1099 = smul.u32 14, %s15
        %p1100 = scmp.lt.s32.totalorder %s1099, 27
        %s1101 = scalar_select %p1100, %s1099, 27
        %s1102 = smul.addr %s1101, 8
        %s1103 = scalar_lea.vmem %s3, %s1102
        // Predicated region
        $region37: #{tpu_custom_call.1} parent=31 // pred_check
          %p1104 = pneg %p101
        $region38: #{tpu_custom_call.1} parent=31 // pred_check_branch
          %1106 = sbr.rel (%p1104) target = $region40
        $region39: #{tpu_custom_call.1} parent=31 // pred_region
          %s1107 = smul.u32 14, %s15
        $region40: #{tpu_custom_call.1} parent=31 // pred_fallthru
          _
      $region32: #{tpu_custom_call.1} parent=5 // pred_fallthru
        _
      %p1108 = scmp.le.s32.totalorder 2, %s10
      // Predicated region
      $region41: #{tpu_custom_call.1} parent=5 // pred_check
        %p1109 = pneg %p1108
      $region42: #{tpu_custom_call.1} parent=5 // pred_check_branch
        %1111 = sbr.rel (%p1109) target = $region44
      $region43: #{tpu_custom_call.1} parent=5 // pred_region
        %s1112 = ssub.s32 %s10, 2
        // Predicated region
        $region45: #{tpu_custom_call.1} parent=43 // pred_check
          %p1113 = pneg %p107
        $region46: #{tpu_custom_call.1} parent=43 // pred_check_branch
          %1115 = sbr.rel (%p1113) target = $region48
        $region47: #{tpu_custom_call.1} parent=43 // pred_region
          %s1116 = smul.u32 14, %s16
          %p1117 = scmp.lt.s32.totalorder %s1116, 27
          %s1118 = scalar_select %p1117, %s1116, 27
          %s1119 = smul.addr %s1118, 8
          %s1120 = scalar_lea.vmem %s3, %s1119
        $region48: #{tpu_custom_call.1} parent=43 // pred_fallthru
          _
      $region44: #{tpu_custom_call.1} parent=5 // pred_fallthru
        _
    $region6: #{tpu_custom_call.1} parent=1 // loop_footer
      %s14 = sadd.s32 1, %s10
    $region7: #{tpu_custom_call.1} parent=1 // loop_footer_branch
      %9 = sbr.rel target = $region3
    $region8: #{tpu_custom_call.1} parent=1 // loop_exit
      _
    %1121 = vsyncpa [#allocation3], 1
    %s1122 = scalar_lea.sflag [#allocation3], 1
    %1123 = vsyncpa %s1122, 1

</llo_original>
